<compile_context>
chip_gen: v6e
topology: v6e:2x2x1
jax: 0.10.0
libtpu: 0.0.40
codegen_flags: <defaults>
</compile_context>

<pallas_src>
import jax
import jax.numpy as jnp
from jax.experimental import pallas as pl
from jax.experimental.pallas import tpu as pltpu


LANE = 128   # lane width (last dim of every vreg)
SUB = 16     # row granule safe for both f32 (8,128) and bf16 (16,128) tiling


def _detect_v7x():
    """True only on 2-TensorCore (v7x-class) chips; safe default elsewhere."""
    try:
        kind = jax.devices()[0].device_kind.lower().replace(" ", "")
    except Exception:
        return False
    return ("v7" in kind) or ("tpu7" in kind)


def _make_silog_kernel(tile_r, tiles_per_core, num_tiles, tail_rows, may_overrun):
    """Kernel closure over static tiling parameters.

    tail_rows == tile_r  -> every real tile is full (no row mask anywhere).
    tail_rows  < tile_r  -> only the last tile builds an iota row mask.
    may_overrun          -> cores*tiles_per_core > num_tiles (skip extras).
    """
    needs_row_mask = tail_rows != tile_r

    def fold(x):
        # (tile_r, 128) -> (8, 128) using pure VPU vreg adds (no XLU).
        return x.reshape(tile_r // 8, 8, LANE).sum(axis=0)

    def kernel(pred_ref, targ_ref, sum_ref, sumsq_ref, cnt_ref):
        c = pl.program_id(0)   # core-split axis
        i = pl.program_id(1)   # reduction axis ("arbitrary")

        @pl.when(i == 0)
        def _init():
            sum_ref[...] = jnp.zeros_like(sum_ref)
            sumsq_ref[...] = jnp.zeros_like(sumsq_ref)
            cnt_ref[...] = jnp.zeros_like(cnt_ref)

        logical_tile = c * tiles_per_core + i

        def accumulate(row_mask):
            # Cast is a no-op for f32, cheap widening for bf16/f16.
            p = pred_ref[...].astype(jnp.float32)
            t = targ_ref[...].astype(jnp.float32)
            valid = t > 0.0
            if row_mask is not None:
                valid = valid & row_mask
            # Single EUP log + one divide; the select kills NaN/inf produced
            # on masked lanes, so no input guarding is needed.
            dl = jnp.where(valid, jnp.log(t / p), 0.0)
            sum_ref[...] += fold(dl)[None]
            sumsq_ref[...] += fold(dl * dl)[None]
            cnt_ref[...] += fold(valid.astype(jnp.float32))[None]

        if needs_row_mask:
            if num_tiles > 1:
                # Interior (full) tiles: no iota / compare / AND work.
                @pl.when(logical_tile < num_tiles - 1)
                def _full():
                    accumulate(None)

            # Last (partial) tile: row bound is a static constant.
            @pl.when(logical_tile == num_tiles - 1)
            def _last():
                rows = jax.lax.broadcasted_iota(jnp.int32, (tile_r, LANE), 0)
                accumulate(rows < tail_rows)
            # Overrun tiles (logical_tile >= num_tiles) match neither branch.
        elif may_overrun:
            @pl.when(logical_tile < num_tiles)
            def _full():
                accumulate(None)
        else:
            accumulate(None)

    return kernel


def silog_loss(pred, target, lambd=0.5):
    """JAX/Pallas equivalent of SiLogLoss.forward(pred, target)."""
    p = jnp.asarray(pred).reshape(-1)
    t = jnp.asarray(target).reshape(-1)
    assert p.shape == t.shape, "pred/target must have the same number of elements"
    n = p.shape[0]

    # Keep narrow float dtypes as-is (halves HBM traffic); upcast anything else.
    keep = (jnp.dtype("float32"), jnp.dtype("bfloat16"), jnp.dtype("float16"))
    if p.dtype not in keep:
        p = p.astype(jnp.float32)
    if t.dtype not in keep:
        t = t.astype(jnp.float32)

    is_v7x = _detect_v7x()
    num_cores = 2 if is_v7x else 1

    # Kernel covers the 128-aligned prefix only; the (<128 element) tail is
    # folded in below in plain JAX, so no full-array pad copy is ever made.
    n_main = n - (n % LANE)
    R = n_main // LANE

    s = jnp.float32(0.0)
    ss = jnp.float32(0.0)
    cnt = jnp.float32(0.0)

    if R > 0:
        p2 = (p if n_main == n else p[:n_main]).reshape(R, LANE)
        t2 = (t if n_main == n else t[:n_main]).reshape(R, LANE)

        # dtype-aware tile: ~1 MiB (v5e/v6e) or ~2 MiB (v7x) of the widest
        # input per block -> 2048/4096 f32 rows, 4096/8192 bf16 rows.
        itemsize = max(p2.dtype.itemsize, t2.dtype.itemsize)
        tile_bytes = (2 if is_v7x else 1) * 1024 * 1024
        big_tile_r = max(SUB, tile_bytes // (LANE * itemsize))

        r_arr = R
        if R >= big_tile_r:
            tile_r = big_tile_r                 # remainder masked in-kernel
        elif R >= SUB:
            tile_r = SUB * (R // SUB)           # no pad; remainder masked
        else:
            tile_r = SUB                        # tiny input: pad a few rows
            p2 = jnp.pad(p2, ((0, SUB - R), (0, 0)), constant_values=1.0)
            t2 = jnp.pad(t2, ((0, SUB - R), (0, 0)), constant_values=0.0)
            r_arr = SUB

        num_tiles = pl.cdiv(r_arr, tile_r)
        tiles_per_core = pl.cdiv(num_tiles, num_cores)
        tail_rows = r_arr - (num_tiles - 1) * tile_r   # valid rows in last tile
        may_overrun = tiles_per_core * num_cores > num_tiles

        # Clamp so the DMA never starts past the array end; overrun tiles are
        # skipped inside the kernel, so the duplicated read contributes zero.
        def in_map(c, i):
            return (jnp.minimum(c * tiles_per_core + i, num_tiles - 1), 0)

        def make_in_spec():
            if is_v7x:
                try:    # triple-buffer short (~0.3us) steps on v7x
                    return pl.BlockSpec((tile_r, LANE), in_map,
                                        pipeline_mode=pl.Buffered(3))
                except TypeError:
                    pass
            return pl.BlockSpec((tile_r, LANE), in_map)

        in_spec = make_in_spec()
        out_spec = pl.BlockSpec((1, 8, LANE), lambda c, i: (c, 0, 0))
        part_shape = jax.ShapeDtypeStruct((num_cores, 8, LANE), jnp.float32)

        kernel = _make_silog_kernel(tile_r, tiles_per_core, num_tiles,
                                    tail_rows, may_overrun)

        if num_cores > 1:
            dim_sem = (getattr(pltpu, "CORE_PARALLEL", "parallel"),
                       getattr(pltpu, "ARBITRARY", "arbitrary"))
        else:
            dim_sem = ("arbitrary", "arbitrary")

        cost = pl.CostEstimate(
            flops=6 * n_main,
            transcendentals=n_main,
            bytes_accessed=(p2.size * p2.dtype.itemsize
                            + t2.size * t2.dtype.itemsize
                            + 3 * num_cores * 8 * LANE * 4))

        parts = pl.pallas_call(
            kernel,
            out_shape=[part_shape, part_shape, part_shape],
            grid_spec=pltpu.PrefetchScalarGridSpec(
                num_scalar_prefetch=0,
                grid=(num_cores, tiles_per_core),
                in_specs=[in_spec, in_spec],
                out_specs=[out_spec, out_spec, out_spec],
            ),
            compiler_params=pltpu.CompilerParams(
                dimension_semantics=dim_sem,
                vmem_limit_bytes=32 * 1024 * 1024,
            ),
            cost_estimate=cost,
        )(p2, t2)

        # Tiny final reduction of the lane-dense per-core partials.
        s = jnp.sum(parts[0])
        ss = jnp.sum(parts[1])
        cnt = jnp.sum(parts[2])

    # Lane-unaligned tail (< 128 elements): fold into the sums in plain JAX.
    if n_main != n:
        tp = p[n_main:].astype(jnp.float32)
        tt = t[n_main:].astype(jnp.float32)
        tmask = tt > 0.0
        tdl = jnp.where(tmask, jnp.log(tt / tp), 0.0)
        s = s + jnp.sum(tdl)
        ss = ss + jnp.sum(tdl * tdl)
        cnt = cnt + jnp.sum(tmask.astype(jnp.float32))

    # Matches PyTorch exactly: cnt == 0 (no target > 0), or a slightly
    # negative variance term from rounding, yields NaN just like the module.
    mean = s / cnt
    mean_sq = ss / cnt
    return jnp.sqrt(mean_sq - lambd * mean * mean)


def _silog_loss_ref(pred, target, lambd=0.5):
    """Pure-JAX reference (matches PyTorch semantics)."""
    pred = jnp.asarray(pred).astype(jnp.float32)
    target = jnp.asarray(target).astype(jnp.float32)
    mask = target > 0
    dl = jnp.where(mask, jnp.log(target) - jnp.log(pred), 0.0)
    c = jnp.sum(mask)
    m = jnp.sum(dl) / c
    msq = jnp.sum(dl * dl) / c
    return jnp.sqrt(msq - lambd * m * m)


if __name__ == "__main__":
    key = jax.random.PRNGKey(0)

    def make_inputs(shape, k):
        k1, k2 = jax.random.split(k)
        pred = jax.random.uniform(k1, shape, jnp.float32, minval=0.1, maxval=10.0)
        # Targets include non-positive values to exercise the validity mask.
        target = jax.random.uniform(k2, shape, jnp.float32, minval=-1.0, maxval=10.0)
        return pred, target

    # Depth-style NCHW inputs, small shapes exercising the different paths:
    shapes = [
        (2, 1, 16, 16),    # 512 elems: 128-aligned, single tiny tile
        (2, 1, 13, 11),    # 286 elems: <128-element lane tail handled in JAX
        (1, 1, 35, 128),   # 4480 elems: partial last row tile (in-kernel mask)
    ]
    keys = jax.random.split(key, len(shapes))
    for shape, k in zip(shapes, keys):
        pred, target = make_inputs(shape, k)
        loss = jax.block_until_ready(silog_loss(pred, target, lambd=0.5))
        ref = _silog_loss_ref(pred, target, lambd=0.5)
        assert jnp.allclose(loss, ref, rtol=1e-5, atol=1e-6), (shape, loss, ref)

    print("KERNEL_OK")
</pallas_src>

<mosaic_0001>
module attributes {stable_mosaic.version = 11 : i64} {
  func.func @kernel(%arg0: i32, %arg1: i32, %arg2: memref<16x128xf32, #tpu.memory_space<vmem>>, %arg3: memref<16x128xf32, #tpu.memory_space<vmem>>, %arg4: memref<1x8x128xf32, #tpu.memory_space<vmem>>, %arg5: memref<1x8x128xf32, #tpu.memory_space<vmem>>, %arg6: memref<1x8x128xf32, #tpu.memory_space<vmem>>) attributes {dimension_semantics = [#tpu.dimension_semantics<arbitrary>, #tpu.dimension_semantics<arbitrary>], iteration_bounds = array<i64: 1, 1>, scalar_prefetch = 0 : i64, scratch_operands = 0 : i64, tpu.core_type = #tpu.core_type<tc>, window_params = [{transform_indices = @transform_0, window_bounds = array<i64: 16, 128>}, {transform_indices = @transform_1, window_bounds = array<i64: 16, 128>}, {transform_indices = @transform_2, window_bounds = array<i64: 1, 8, 128>}, {transform_indices = @transform_3, window_bounds = array<i64: 1, 8, 128>}, {transform_indices = @transform_4, window_bounds = array<i64: 1, 8, 128>}]} {
    %c0_i32 = arith.constant 0 : i32
    %0 = arith.cmpi eq, %arg1, %c0_i32 : i32
    %1 = arith.extui %0 : i1 to i32
    %c0_i32_0 = arith.constant 0 : i32
    %2 = arith.cmpi ne, %1, %c0_i32_0 : i32
    scf.if %2 {
      %cst_26 = arith.constant 0.000000e+00 : f32
      %32 = vector.broadcast %cst_26 : f32 to vector<1x8x128xf32>
      %c0_27 = arith.constant 0 : index
      %c0_28 = arith.constant 0 : index
      %c0_29 = arith.constant 0 : index
      %33 = vector.load %arg4[%c0_27, %c0_28, %c0_29] : memref<1x8x128xf32, #tpu.memory_space<vmem>>, vector<1x8x128xf32>
      tpu.vector_store %arg4[%c0_27, %c0_28, %c0_29], %32 {strides = array<i32>} : memref<1x8x128xf32, #tpu.memory_space<vmem>>, vector<1x8x128xf32>,
      %cst_30 = arith.constant 0.000000e+00 : f32
      %34 = vector.broadcast %cst_30 : f32 to vector<1x8x128xf32>
      %c0_31 = arith.constant 0 : index
      %c0_32 = arith.constant 0 : index
      %c0_33 = arith.constant 0 : index
      %35 = vector.load %arg5[%c0_31, %c0_32, %c0_33] : memref<1x8x128xf32, #tpu.memory_space<vmem>>, vector<1x8x128xf32>
      tpu.vector_store %arg5[%c0_31, %c0_32, %c0_33], %34 {strides = array<i32>} : memref<1x8x128xf32, #tpu.memory_space<vmem>>, vector<1x8x128xf32>,
      %cst_34 = arith.constant 0.000000e+00 : f32
      %36 = vector.broadcast %cst_34 : f32 to vector<1x8x128xf32>
      %c0_35 = arith.constant 0 : index
      %c0_36 = arith.constant 0 : index
      %c0_37 = arith.constant 0 : index
      %37 = vector.load %arg6[%c0_35, %c0_36, %c0_37] : memref<1x8x128xf32, #tpu.memory_space<vmem>>, vector<1x8x128xf32>
      tpu.vector_store %arg6[%c0_35, %c0_36, %c0_37], %36 {strides = array<i32>} : memref<1x8x128xf32, #tpu.memory_space<vmem>>, vector<1x8x128xf32>,
    } else {
    }
    %c0 = arith.constant 0 : index
    %c0_1 = arith.constant 0 : index
    %3 = vector.load %arg2[%c0, %c0_1] : memref<16x128xf32, #tpu.memory_space<vmem>>, vector<16x128xf32>
    %c0_2 = arith.constant 0 : index
    %c0_3 = arith.constant 0 : index
    %4 = vector.load %arg3[%c0_2, %c0_3] : memref<16x128xf32, #tpu.memory_space<vmem>>, vector<16x128xf32>
    %cst = arith.constant 0.000000e+00 : f32
    %5 = vector.broadcast %cst : f32 to vector<16x128xf32>
    %6 = arith.cmpf ogt, %4, %5 : vector<16x128xf32>
    %7 = arith.divf %4, %3 : vector<16x128xf32>
    %8 = math.log %7 : vector<16x128xf32>
    %cst_4 = arith.constant 0.000000e+00 : f32
    %9 = vector.broadcast %cst_4 : f32 to vector<16x128xf32>
    %10 = arith.select %6, %8, %9 : vector<16x128xi1>, vector<16x128xf32>
    %c0_5 = arith.constant 0 : index
    %c0_6 = arith.constant 0 : index
    %c0_7 = arith.constant 0 : index
    %11 = vector.load %arg4[%c0_5, %c0_6, %c0_7] : memref<1x8x128xf32, #tpu.memory_space<vmem>>, vector<1x8x128xf32>
    %12 = vector.shape_cast %10 : vector<16x128xf32> to vector<2x8x128xf32>
    %cst_8 = arith.constant dense<0.000000e+00> : vector<8x128xf32>
    %13 = vector.multi_reduction <add>, %12, %cst_8 [0] : vector<2x8x128xf32> to vector<8x128xf32>
    %14 = vector.shape_cast %13 : vector<8x128xf32> to vector<1x8x128xf32>
    %15 = arith.addf %11, %14 : vector<1x8x128xf32>
    %c0_9 = arith.constant 0 : index
    %c0_10 = arith.constant 0 : index
    %c0_11 = arith.constant 0 : index
    %16 = vector.load %arg4[%c0_9, %c0_10, %c0_11] : memref<1x8x128xf32, #tpu.memory_space<vmem>>, vector<1x8x128xf32>
    tpu.vector_store %arg4[%c0_9, %c0_10, %c0_11], %15 {strides = array<i32>} : memref<1x8x128xf32, #tpu.memory_space<vmem>>, vector<1x8x128xf32>,
    %c0_12 = arith.constant 0 : index
    %c0_13 = arith.constant 0 : index
    %c0_14 = arith.constant 0 : index
    %17 = vector.load %arg5[%c0_12, %c0_13, %c0_14] : memref<1x8x128xf32, #tpu.memory_space<vmem>>, vector<1x8x128xf32>
    %18 = arith.mulf %10, %10 : vector<16x128xf32>
    %19 = vector.shape_cast %18 : vector<16x128xf32> to vector<2x8x128xf32>
    %cst_15 = arith.constant dense<0.000000e+00> : vector<8x128xf32>
    %20 = vector.multi_reduction <add>, %19, %cst_15 [0] : vector<2x8x128xf32> to vector<8x128xf32>
    %21 = vector.shape_cast %20 : vector<8x128xf32> to vector<1x8x128xf32>
    %22 = arith.addf %17, %21 : vector<1x8x128xf32>
    %c0_16 = arith.constant 0 : index
    %c0_17 = arith.constant 0 : index
    %c0_18 = arith.constant 0 : index
    %23 = vector.load %arg5[%c0_16, %c0_17, %c0_18] : memref<1x8x128xf32, #tpu.memory_space<vmem>>, vector<1x8x128xf32>
    tpu.vector_store %arg5[%c0_16, %c0_17, %c0_18], %22 {strides = array<i32>} : memref<1x8x128xf32, #tpu.memory_space<vmem>>, vector<1x8x128xf32>,
    %c0_19 = arith.constant 0 : index
    %c0_20 = arith.constant 0 : index
    %c0_21 = arith.constant 0 : index
    %24 = vector.load %arg6[%c0_19, %c0_20, %c0_21] : memref<1x8x128xf32, #tpu.memory_space<vmem>>, vector<1x8x128xf32>
    %25 = arith.extui %6 : vector<16x128xi1> to vector<16x128xi32>
    %26 = arith.sitofp %25 : vector<16x128xi32> to vector<16x128xf32>
    %27 = vector.shape_cast %26 : vector<16x128xf32> to vector<2x8x128xf32>
    %cst_22 = arith.constant dense<0.000000e+00> : vector<8x128xf32>
    %28 = vector.multi_reduction <add>, %27, %cst_22 [0] : vector<2x8x128xf32> to vector<8x128xf32>
    %29 = vector.shape_cast %28 : vector<8x128xf32> to vector<1x8x128xf32>
    %30 = arith.addf %24, %29 : vector<1x8x128xf32>
    %c0_23 = arith.constant 0 : index
    %c0_24 = arith.constant 0 : index
    %c0_25 = arith.constant 0 : index
    %31 = vector.load %arg6[%c0_23, %c0_24, %c0_25] : memref<1x8x128xf32, #tpu.memory_space<vmem>>, vector<1x8x128xf32>
    tpu.vector_store %arg6[%c0_23, %c0_24, %c0_25], %30 {strides = array<i32>} : memref<1x8x128xf32, #tpu.memory_space<vmem>>, vector<1x8x128xf32>,
    return
  }
  func.func @transform_0(%arg0: i32, %arg1: i32) -> (i32, i32) {
    %c1_i32 = arith.constant 1 : i32
    %0 = arith.muli %arg0, %c1_i32 : i32
    %1 = arith.addi %0, %arg1 : i32
    %c0_i32 = arith.constant 0 : i32
    %2 = arith.minsi %1, %c0_i32 : i32
    %c0_i32_0 = arith.constant 0 : i32
    %c0_i32_1 = arith.constant 0 : i32
    return %2, %c0_i32_0 : i32, i32
  }
  func.func @transform_1(%arg0: i32, %arg1: i32) -> (i32, i32) {
    %c1_i32 = arith.constant 1 : i32
    %0 = arith.muli %arg0, %c1_i32 : i32
    %1 = arith.addi %0, %arg1 : i32
    %c0_i32 = arith.constant 0 : i32
    %2 = arith.minsi %1, %c0_i32 : i32
    %c0_i32_0 = arith.constant 0 : i32
    %c0_i32_1 = arith.constant 0 : i32
    return %2, %c0_i32_0 : i32, i32
  }
  func.func @transform_2(%arg0: i32, %arg1: i32) -> (i32, i32, i32) {
    %c0_i32 = arith.constant 0 : i32
    %c0_i32_0 = arith.constant 0 : i32
    %c0_i32_1 = arith.constant 0 : i32
    return %arg0, %c0_i32, %c0_i32_0 : i32, i32, i32
  }
  func.func @transform_3(%arg0: i32, %arg1: i32) -> (i32, i32, i32) {
    %c0_i32 = arith.constant 0 : i32
    %c0_i32_0 = arith.constant 0 : i32
    %c0_i32_1 = arith.constant 0 : i32
    return %arg0, %c0_i32, %c0_i32_0 : i32, i32, i32
  }
  func.func @transform_4(%arg0: i32, %arg1: i32) -> (i32, i32, i32) {
    %c0_i32 = arith.constant 0 : i32
    %c0_i32_0 = arith.constant 0 : i32
    %c0_i32_1 = arith.constant 0 : i32
    return %arg0, %c0_i32, %c0_i32_0 : i32, i32, i32
  }
}

</mosaic_0001>

<llo_original>
// kernel: tpu_custom_call.1
$region0: #{tpu_custom_call.1}
  #allocation0 [shape = 'u32[]', space=smem, size = 0x4, offset = 0x4, fixed_abs, tag = 'smem constant byte address 0x4 - core index']
  #allocation1 [shape = 'u32[144,128]{1,0:T(1,128)}', space=vmem, size = 0x12000, scoped, tag = 'internal scratch']
  %s0 = inlined_call_operand.hbm [shape: f32[16,128], index: 0, kind: input, shape index: {}]
  %s1 = inlined_call_operand.hbm [shape: f32[16,128], index: 1, kind: input, shape index: {}]
  %s2 = inlined_call_operand.hbm [shape: f32[1,8,128], index: 2, kind: output, shape index: {0}]
  %s3 = inlined_call_operand.hbm [shape: f32[1,8,128], index: 3, kind: output, shape index: {1}]
  %s4 = inlined_call_operand.hbm [shape: f32[1,8,128], index: 4, kind: output, shape index: {2}]
  %5 = xla_tuple %s2, %s3, %s4
  %s6 = sld [smem:[#allocation0]]
  $region46: #{tpu_custom_call.1} parent=0
    _
  %s8 = ssub.s32 1, %s6
  %s9 = scalar_select 0, %s8, %s6
  $region1: #{tpu_custom_call.1} parent=0
    #allocation2 [shape = 'u8[8192]{0}', space=vmem, size = 0x2000, scoped, tag = 'input window, operand 0, single buffered']
    #allocation3 [shape = 's32[1]{0}', space=sflag, size = 0x4, scoped, tag = 'scoped memory for tpu_custom_call.1']
    #allocation4 [shape = 's32[1]{0}', space=sflag, size = 0x4, scoped, tag = 'scoped memory for tpu_custom_call.1']
    #allocation5 [shape = 'u8[8192]{0}', space=vmem, size = 0x2000, scoped, tag = 'input window, operand 1, single buffered']
    #allocation6 [shape = 's32[1]{0}', space=sflag, size = 0x4, scoped, tag = 'scoped memory for tpu_custom_call.1']
    #allocation7 [shape = 'u8[4096]{0}', space=vmem, size = 0x1000, scoped, tag = 'output window, operand 0, single buffered']
    #allocation8 [shape = 'u8[4096]{0}', space=vmem, size = 0x1000, scoped, tag = 'output window, operand 1, single buffered']
    #allocation9 [shape = 's32[1]{0}', space=sflag, size = 0x4, scoped, tag = 'scoped memory for tpu_custom_call.1']
    #allocation10 [shape = 'u8[4096]{0}', space=vmem, size = 0x1000, scoped, tag = 'output window, operand 2, single buffered']
    %10 = vsyncpa [#allocation3], 0
    %11 = vsyncpa [#allocation6], 0
    %12 = vsyncpa [#allocation4], 0
    %13 = vsyncpa [#allocation9], 0
    // Predicated region
    $region2: #{tpu_custom_call.1} parent=1 // pred_check
      _
    $region3: #{tpu_custom_call.1} parent=1 // pred_check_branch
      %15 = sbr.rel (0) target = $region5
    $region4: #{tpu_custom_call.1} parent=1 // pred_region
      %s16 = sadd.s32 0, 0
      %p17 = scmp.lt.s32.totalorder %s16, 0
      %s18 = scalar_select %p17, %s16, 0
      %s19 = smul.u32 2, %s18
      %s21 = ssub.s32 256, 256
      %22 = vsyncadd [#allocation3], %s21
      %s23 = smul.addr %s19, 128
      %s24 = scalar_lea.hbm %s0, %s23
      %s25 = sshll.u32 [#allocation2], 4
      %s26 = int_to_ptr.vmem [resolvable:$true] %s25
      %31 = dma.hbm_to_vmem [thread:$0]  %s24, 256, %s26, [#allocation3], 128, 128, 8
    $region5: #{tpu_custom_call.1} parent=1 // pred_fallthru
      _
    // Predicated region
    $region6: #{tpu_custom_call.1} parent=1 // pred_check
      _
    $region7: #{tpu_custom_call.1} parent=1 // pred_check_branch
      %33 = sbr.rel (0) target = $region9
    $region8: #{tpu_custom_call.1} parent=1 // pred_region
      %s34 = sadd.s32 0, 0
      %p35 = scmp.lt.s32.totalorder %s34, 0
      %s36 = scalar_select %p35, %s34, 0
      %s37 = smul.u32 2, %s36
      %s39 = ssub.s32 256, 256
      %40 = vsyncadd [#allocation6], %s39
      %s41 = smul.addr %s37, 128
      %s42 = scalar_lea.hbm %s1, %s41
      %s43 = sshll.u32 [#allocation5], 4
      %s44 = int_to_ptr.vmem [resolvable:$true] %s43
      %49 = dma.hbm_to_vmem [thread:$0]  %s42, 256, %s44, [#allocation6], 128, 128, 8
    $region9: #{tpu_custom_call.1} parent=1 // pred_fallthru
      _
    // Predicated region
    $region10: #{tpu_custom_call.1} parent=1 // pred_check
      _
    $region11: #{tpu_custom_call.1} parent=1 // pred_check_branch
      %51 = sbr.rel (0) target = $region13
    $region12: #{tpu_custom_call.1} parent=1 // pred_region
      %52 = dma.done [#allocation3], 256
    $region13: #{tpu_custom_call.1} parent=1 // pred_fallthru
      _
    // Predicated region
    $region14: #{tpu_custom_call.1} parent=1 // pred_check
      _
    $region15: #{tpu_custom_call.1} parent=1 // pred_check_branch
      %54 = sbr.rel (0) target = $region17
    $region16: #{tpu_custom_call.1} parent=1 // pred_region
      %55 = dma.done [#allocation6], 256
    $region17: #{tpu_custom_call.1} parent=1 // pred_fallthru
      _
    %s56 = sadd.s32 0, 0
    %p57 = scmp.lt.s32.totalorder %s56, 0
    %s58 = scalar_select %p57, %s56, 0
    %s59 = smul.u32 2, %s58
    %s60 = sadd.s32 0, 0
    %p61 = scmp.lt.s32.totalorder %s60, 0
    %s62 = scalar_select %p61, %s60, 0
    %s63 = smul.u32 2, %s62
    %p64 = scmp.eq.s32.totalorder 0, 0
    // Predicated region
    $region18: #{tpu_custom_call.1} parent=1 // pred_check
      %p65 = pneg %p64
    $region19: #{tpu_custom_call.1} parent=1 // pred_check_branch
      %67 = sbr.rel (%p65) target = $region21
    $region20: #{tpu_custom_call.1} parent=1 // pred_region
      %68 = vst [vmem:[#allocation7] sm:$0xff] 0.0
      %69 = vst [vmem:[#allocation8] sm:$0xff] 0.0
      %70 = vst [vmem:[#allocation10] sm:$0xff] 0.0
    $region21: #{tpu_custom_call.1} parent=1 // pred_fallthru
      _
    %v71 = vld [vmem:[#allocation2] sm:$0xff]
    %v72 = vld [vmem:[#allocation2 + $0x8] sm:$0xff]
    %v73 = vld [vmem:[#allocation5] sm:$0xff]
    %v74 = vld [vmem:[#allocation5 + $0x8] sm:$0xff]
    %vm75 = vcmp.gt.f32.partialorder %v73, 0.0
    %vm76 = vcmp.gt.f32.partialorder %v74, 0.0
    %v77 = vrcp.pop %v71
    %v78 = vmul.f32 %v73, %v77
    %v79 = vrcp.pop %v72
    %v80 = vmul.f32 %v74, %v79
    %v81 = vlog2.pop %v78
    %v82 = vmul.f32 %v81, 0.6931472
    %v83 = vlog2.pop %v80
    %v84 = vmul.f32 %v83, 0.6931472
    %v85 = vsel %vm75, %v82, 0.0
    %v86 = vsel %vm76, %v84, 0.0
    %v87 = vld [vmem:[#allocation7] sm:$0xff]
    %v88 = vadd.f32 %v85, %v86
    %v89 = vadd.f32 %v87, %v88
    %90 = vst [vmem:[#allocation7] sm:$0xff] %v89
    %v91 = vld [vmem:[#allocation8] sm:$0xff]
    %v92 = vmul.f32 %v85, %v85
    %v93 = vmul.f32 %v86, %v86
    %v94 = vadd.f32 %v92, %v93
    %v95 = vadd.f32 %v91, %v94
    %96 = vst [vmem:[#allocation8] sm:$0xff] %v95
    %v97 = vld [vmem:[#allocation10] sm:$0xff]
    %v98 = vsel %vm75, 1, 0
    %v99 = vsel %vm76, 1, 0
    %v100 = vcvt.s32.f32 %v98
    %v101 = vcvt.s32.f32 %v99
    %v102 = vadd.f32 %v100, %v101
    %v103 = vadd.f32 %v97, %v102
    %104 = vst [vmem:[#allocation10] sm:$0xff] %v103
    // Predicated region
    $region22: #{tpu_custom_call.1} parent=1 // pred_check
      _
    $region23: #{tpu_custom_call.1} parent=1 // pred_check_branch
      %106 = sbr.rel (0) target = $region25
    $region24: #{tpu_custom_call.1} parent=1 // pred_region
      %s108 = ssub.s32 128, 128
      %109 = vsyncadd [#allocation4], %s108
      %s111 = sshll.u32 [#allocation7], 4
      %s112 = int_to_ptr.vmem [resolvable:$true] %s111
      %114 = dma.vmem_to_hbm [thread:$0]  %s112, 128, %s2, [#allocation4]
    $region25: #{tpu_custom_call.1} parent=1 // pred_fallthru
      _
    // Predicated region
    $region26: #{tpu_custom_call.1} parent=1 // pred_check
      _
    $region27: #{tpu_custom_call.1} parent=1 // pred_check_branch
      %116 = sbr.rel (0) target = $region29
    $region28: #{tpu_custom_call.1} parent=1 // pred_region
      %s118 = ssub.s32 128, 128
      %119 = vsyncadd [#allocation9], %s118
      %s121 = sshll.u32 [#allocation8], 4
      %s122 = int_to_ptr.vmem [resolvable:$true] %s121
      %124 = dma.vmem_to_hbm [thread:$0]  %s122, 128, %s3, [#allocation9]
    $region29: #{tpu_custom_call.1} parent=1 // pred_fallthru
      _
    // Predicated region
    $region30: #{tpu_custom_call.1} parent=1 // pred_check
      _
    $region31: #{tpu_custom_call.1} parent=1 // pred_check_branch
      %126 = sbr.rel (0) target = $region33
    $region32: #{tpu_custom_call.1} parent=1 // pred_region
      %s128 = ssub.s32 128, 128
      %129 = vsyncadd [#allocation9], %s128
      %s131 = sshll.u32 [#allocation10], 4
      %s132 = int_to_ptr.vmem [resolvable:$true] %s131
      %134 = dma.vmem_to_hbm [thread:$0]  %s132, 128, %s4, [#allocation9]
    $region33: #{tpu_custom_call.1} parent=1 // pred_fallthru
      _
    // Predicated region
    $region34: #{tpu_custom_call.1} parent=1 // pred_check
      _
    $region35: #{tpu_custom_call.1} parent=1 // pred_check_branch
      %136 = sbr.rel (0) target = $region37
    $region36: #{tpu_custom_call.1} parent=1 // pred_region
      %137 = dma.done [#allocation4], 128
    $region37: #{tpu_custom_call.1} parent=1 // pred_fallthru
      _
    // Predicated region
    $region38: #{tpu_custom_call.1} parent=1 // pred_check
      _
    $region39: #{tpu_custom_call.1} parent=1 // pred_check_branch
      %139 = sbr.rel (0) target = $region41
    $region40: #{tpu_custom_call.1} parent=1 // pred_region
      %140 = dma.done [#allocation9], 128
    $region41: #{tpu_custom_call.1} parent=1 // pred_fallthru
      _
    // Predicated region
    $region42: #{tpu_custom_call.1} parent=1 // pred_check
      _
    $region43: #{tpu_custom_call.1} parent=1 // pred_check_branch
      %142 = sbr.rel (0) target = $region45
    $region44: #{tpu_custom_call.1} parent=1 // pred_region
      %143 = dma.done [#allocation9], 128
    $region45: #{tpu_custom_call.1} parent=1 // pred_fallthru
      _
    %144 = vsyncpa [#allocation3], 1
    %145 = vsyncpa [#allocation6], 1
    %146 = vsyncpa [#allocation4], 1
    %147 = vsyncpa [#allocation9], 1

</llo_original>
